<compile_context>
chip_gen: v5e
topology: v5e:2x2
jax: 0.10.0
libtpu: 0.0.40
codegen_flags: <defaults>
</compile_context>

<pallas_src>
import functools

import jax
import jax.numpy as jnp
from jax.experimental import pallas as pl
from jax.experimental.pallas import tpu as pltpu


# ----------------------------------------------------------------------------
# Pallas kernel: one (S, 128)-pixel tile -> softmax over classes + partial sums
# ----------------------------------------------------------------------------
def _loss_kernel(logits_ref, tgt_ref, dist_ref, acc_ref, *,
                 num_classes, gamma, gamma_int, ignore_index, approx_recip):
    """acc_ref rows (lane-partial sums; lane reduction happens in JAX afterwards):
         [0   ,  C) : dice intersection   sum(p_c * onehot_c)
         [C   , 2C) : dice prob sum       sum(p_c)
         [2C  , 3C) : dice one-hot count  sum(onehot_c)  (ignored -> class 0)
         [3C  , 4C) : focal partial       sum(onehot_c * (1-p_c)^gamma * logp_c)
         4C         : valid pixel count
         4C + 1     : boundary partial    sum_c sum(p_c * dist_c)
    """
    C = num_classes

    @pl.when(pl.program_id(2) == 0)
    def _():
        acc_ref[...] = jnp.zeros_like(acc_ref)

    t = tgt_ref[...].astype(jnp.float32)                        # (S, 128) labels
    x = [logits_ref[c].astype(jnp.float32) for c in range(C)]   # C x (S, 128)

    # ---- softmax over classes: pure elementwise work across the C slabs ----
    m = x[0]
    for c in range(1, C):
        m = jnp.maximum(m, x[c])
    xs = [xc - m for xc in x]
    ex = [jnp.exp(v) for v in xs]
    denom = ex[0]
    for c in range(1, C):
        denom = denom + ex[c]
    if approx_recip:
        inv_denom = pl.reciprocal(denom, approx=True)           # EUP slot
    else:
        inv_denom = 1.0 / denom
    logd = jnp.log(denom)

    ignoredf = (t == float(ignore_index)).astype(jnp.float32)
    validf = 1.0 - ignoredf

    def acc_row(r, val):                                        # val: (1, 128)
        acc_ref[pl.ds(r, 1), :] += val

    bnd = None
    for c in range(C):
        p_c = ex[c] * inv_denom
        oh = (t == float(c)).astype(jnp.float32)    # ignore_index matches no class
        ohd = oh + ignoredf if c == 0 else oh       # dice: ignored remapped to 0

        acc_row(c, jnp.sum(p_c * ohd, axis=0, keepdims=True))
        acc_row(C + c, jnp.sum(p_c, axis=0, keepdims=True))
        acc_row(2 * C + c, jnp.sum(ohd, axis=0, keepdims=True))

        # focal partial: onehot * (1 - p)^gamma * logp  (negation + alpha outside)
        logp_c = xs[c] - logd
        if gamma_int is None:
            modlogp = ((1.0 - p_c) ** gamma) * logp_c
        elif gamma_int == 0:
            modlogp = logp_c
        else:
            q = 1.0 - p_c
            mod = q
            for _ in range(gamma_int - 1):           # gamma=2 -> q*q, no pow
                mod = mod * q
            modlogp = mod * logp_c
        acc_row(3 * C + c, jnp.sum(oh * modlogp, axis=0, keepdims=True))

        # boundary: sum over classes first, reduce once per tile
        term = p_c * dist_ref[c].astype(jnp.float32)
        bnd = term if bnd is None else bnd + term

    acc_row(4 * C, jnp.sum(validf, axis=0, keepdims=True))
    acc_row(4 * C + 1, jnp.sum(bnd, axis=0, keepdims=True))


# ----------------------------------------------------------------------------
# Plain-JAX helper: exact per-class Euclidean distance transform (separable).
# Equivalent to scipy.ndimage.distance_transform_edt(mask != c) per class.
# ----------------------------------------------------------------------------
def _distance_maps(masks, num_classes):
    # TODO(synk): a true O(HW) Felzenszwalb lower-envelope scan (or host-side
    # precompute) would be preferable for very large images; this separable
    # two-pass form is exact and O(H^2 * W) per class.
    B, H, W = masks.shape
    masks = masks.astype(jnp.int32)
    col = jnp.arange(W, dtype=jnp.int32)
    rows = jnp.arange(H, dtype=jnp.float32)
    big = jnp.int32(2 * (H + W))            # sentinel larger than any real distance
    idx = jnp.broadcast_to(col[None, :], (H, W))
    di2 = (rows[:, None] - rows[None, :]) ** 2                       # (H, H)

    def per_class(mask_b, c):
        feat = mask_b == c                                           # (H, W)
        # pass 1: 1-D distance along each row to the nearest class-c pixel
        left = jax.lax.cummax(jnp.where(feat, idx, -big), axis=1)
        right = jax.lax.cummin(jnp.where(feat, idx, big), axis=1, reverse=True)
        g = jnp.minimum(idx - left, right - idx).astype(jnp.float32)
        g2 = g * g
        # pass 2: column-wise parabola min  D^2(i,j) = min_k ((i-k)^2 + g^2(k,j))
        d2 = jnp.min(di2[:, :, None] + g2[None, :, :], axis=1)       # (H, W)
        dist = jnp.sqrt(d2)
        return jnp.where(jnp.any(feat), dist, 0.0)   # class absent -> 0 everywhere

    def per_sample(mask_b):
        return jnp.stack([per_class(mask_b, c) for c in range(num_classes)], axis=0)

    return jax.vmap(per_sample)(masks)                               # (B, C, H, W)


# ----------------------------------------------------------------------------
# Tile selection: largest 8-aligned row block (rows of 128 pixels) dividing R
# whose double-buffered input footprint fits the VMEM budget.
# ----------------------------------------------------------------------------
def _choose_rows(num_rows, bytes_per_row, max_rows, vmem_budget):
    cap = max(8, int(vmem_budget) // (2 * int(bytes_per_row)))   # double-buffered
    limit = min(int(max_rows), cap)
    if num_rows <= limit:
        return num_rows                      # full extent: always a legal block
    s = (limit // 8) * 8
    while s >= 8:
        if num_rows % s == 0:
            return s
        s -= 8
    # No 8-aligned divisor under the cap: fall back to the full extent (legal;
    # may exceed the budget only for adversarial shapes).
    return num_rows


# ----------------------------------------------------------------------------
# Wrapper
# ----------------------------------------------------------------------------
def weighted_focal_dice_loss(logits, masks, alpha=None, *, gamma=2.0,
                             dice_weight=1.0, shape_weight=1.0, ignore_index=255,
                             smooth=1e-6, max_rows=1024,
                             vmem_budget_bytes=20 << 20,
                             dist_dtype=jnp.bfloat16, approx_reciprocal=False):
    B, C, H, W = logits.shape
    HW = H * W
    if HW % 128 != 0:
        raise ValueError(f"H*W must be a multiple of 128 (got {HW})")
    if C > 256 or int(ignore_index) != int(float(jnp.bfloat16(int(ignore_index)))):
        raise ValueError("labels must be exactly representable in bfloat16")
    R = HW // 128

    # Boundary-term distance maps (exact separable EDT), streamed as bf16.
    dist = _distance_maps(masks, C)

    # Pixel-major views: pixels span both sublanes and lanes; reshapes are free.
    logits_v = logits.reshape(B, C, R, 128)                      # native dtype
    dist_v = dist.reshape(B, C, R, 128).astype(dist_dtype)
    tgt_v = masks.reshape(B, R, 128).astype(jnp.bfloat16)        # exact small ints

    bytes_per_row = 128 * (C * (jnp.dtype(logits.dtype).itemsize
                                + jnp.dtype(dist_dtype).itemsize) + 2)
    S = _choose_rows(R, bytes_per_row, max_rows, vmem_budget_bytes)
    nblk = R // S
    P = 2 if (nblk % 2 == 0 and nblk >= 2) else 1    # 2nd parallel axis (v7x 2-TC)
    J = nblk // P

    gamma_f = float(gamma)
    gamma_int = (int(gamma_f)
                 if (gamma_f.is_integer() and 0.0 <= gamma_f <= 8.0) else None)

    n_acc = 4 * C + 2
    kernel = functools.partial(
        _loss_kernel, num_classes=C, gamma=gamma_f, gamma_int=gamma_int,
        ignore_index=int(ignore_index), approx_recip=bool(approx_reciprocal))

    acc = pl.pallas_call(
        kernel,
        out_shape=jax.ShapeDtypeStruct((B, P, n_acc, 128), jnp.float32),
        grid_spec=pltpu.PrefetchScalarGridSpec(
            num_scalar_prefetch=0,
            grid=(B, P, J),
            in_specs=[
                # NOTE: on v5e, if DMA wait shows up, add pipeline_mode=pl.Buffered(3)
                pl.BlockSpec((None, C, S, 128), lambda b, p, j: (b, 0, p * J + j, 0)),
                pl.BlockSpec((None, S, 128), lambda b, p, j: (b, p * J + j, 0)),
                pl.BlockSpec((None, C, S, 128), lambda b, p, j: (b, 0, p * J + j, 0)),
            ],
            out_specs=pl.BlockSpec((None, None, n_acc, 128),
                                   lambda b, p, j: (b, p, 0, 0)),
        ),
        compiler_params=pltpu.CompilerParams(
            dimension_semantics=("parallel", "parallel", "arbitrary"),
            vmem_limit_bytes=40 << 20),
    )(logits_v, tgt_v, dist_v)

    # ---- tiny epilogue reductions / combination in plain JAX ----
    acc_sum = jnp.sum(acc, axis=(0, 1, 3))                       # (4C + 2,)
    inter = acc_sum[0:C]
    psum = acc_sum[C:2 * C]
    osum = acc_sum[2 * C:3 * C]
    focal_pc = acc_sum[3 * C:4 * C]                              # <= 0, alpha-free
    valid_cnt = acc_sum[4 * C]
    bsum = acc_sum[4 * C + 1]

    alpha_c = (jnp.ones((C,), jnp.float32) if alpha is None
               else jnp.asarray(alpha, jnp.float32).reshape(C))
    focal_l = -jnp.dot(alpha_c, focal_pc) / valid_cnt
    dice = (2.0 * inter + smooth) / (psum + osum + smooth)
    dice_l = 1.0 - jnp.mean(dice)
    shape_l = bsum / (H * W * C * B)
    total = focal_l + dice_weight * dice_l + shape_weight * shape_l
    return total, focal_l, dice_l, shape_l


# ----------------------------------------------------------------------------
# Pure-JAX reference (mirrors the PyTorch semantics) for verification
# ----------------------------------------------------------------------------
def _reference(logits, masks, alpha, *, gamma, dice_weight, shape_weight,
               ignore_index, smooth):
    B, C, H, W = logits.shape
    logits = logits.astype(jnp.float32)

    # focal
    lf = jnp.transpose(logits, (0, 2, 3, 1)).reshape(-1, C)
    tf = masks.reshape(-1)
    valid = (tf != ignore_index)
    logpf = jax.nn.log_softmax(lf, axis=1)
    pf = jnp.exp(logpf)
    oh = jax.nn.one_hot(tf, C, dtype=jnp.float32)          # 255 -> all zeros
    logp_t = jnp.sum(logpf * oh, axis=1)
    p_t = jnp.sum(pf * oh, axis=1)
    alpha_t = jnp.sum(jnp.asarray(alpha, jnp.float32)[None, :] * oh, axis=1)
    fl = -alpha_t * (1.0 - p_t) ** gamma * logp_t
    focal_l = jnp.sum(fl * valid) / jnp.sum(valid)

    # dice
    probs = jax.nn.softmax(logits, axis=1)
    masked = jnp.where(masks == ignore_index, 0, masks)
    ohd = jnp.transpose(jax.nn.one_hot(masked, C, dtype=jnp.float32), (0, 3, 1, 2))
    inter = jnp.sum(probs * ohd, axis=(0, 2, 3))
    card = jnp.sum(probs, axis=(0, 2, 3)) + jnp.sum(ohd, axis=(0, 2, 3))
    dice_l = 1.0 - jnp.mean((2.0 * inter + smooth) / (card + smooth))

    # boundary (full f32 distance maps)
    dist = _distance_maps(masks, C)
    shape_l = jnp.sum(probs * dist) / (H * W * C * B)

    total = focal_l + dice_weight * dice_l + shape_weight * shape_l
    return total, focal_l, dice_l, shape_l


if __name__ == "__main__":
    B, C, H, W = 2, 4, 16, 16
    key = jax.random.PRNGKey(0)
    k_logits, k_masks = jax.random.split(key)

    logits = jax.random.normal(k_logits, (B, C, H, W), dtype=jnp.float32)
    masks = jax.random.randint(k_masks, (B, H, W), 0, C, dtype=jnp.int32)
    # guarantee every class appears in every sample, add a few ignored pixels
    for b in range(B):
        masks = masks.at[b, 0, :C].set(jnp.arange(C, dtype=jnp.int32))
    masks = masks.at[:, H - 1, W - 4:].set(255)

    # deterministic per-class focal alpha (module parameter of shape [C])
    alpha = (1.0 + jnp.arange(C, dtype=jnp.float32)) / C

    out = weighted_focal_dice_loss(
        logits, masks, alpha,
        gamma=2.0, dice_weight=1.0, shape_weight=1.0, ignore_index=255)
    out = jax.block_until_ready(out)

    ref = _reference(
        logits, masks, alpha,
        gamma=2.0, dice_weight=1.0, shape_weight=1.0, ignore_index=255, smooth=1e-6)

    # shape/total tolerances account for the bf16 distance-map stream (~0.4% max)
    names = ["total", "focal", "dice", "shape"]
    tols = [(5e-3, 1e-4), (1e-4, 1e-5), (1e-4, 1e-5), (1e-2, 1e-4)]
    for name, (rt, at), got, want in zip(names, tols, out, ref):
        assert jnp.allclose(got, want, rtol=rt, atol=at), (name, got, want)

    print("KERNEL_OK")
</pallas_src>

<mosaic_0001>
module attributes {stable_mosaic.version = 11 : i64} {
  func.func @_loss_kernel(%arg0: i32, %arg1: i32, %arg2: i32, %arg3: memref<1x4x2x128xf32, #tpu.memory_space<vmem>>, %arg4: memref<1x2x128xbf16, #tpu.memory_space<vmem>>, %arg5: memref<1x4x2x128xbf16, #tpu.memory_space<vmem>>, %arg6: memref<1x1x18x128xf32, #tpu.memory_space<vmem>>) attributes {dimension_semantics = [#tpu.dimension_semantics<parallel>, #tpu.dimension_semantics<parallel>, #tpu.dimension_semantics<arbitrary>], iteration_bounds = array<i64: 2, 1, 1>, scalar_prefetch = 0 : i64, scratch_operands = 0 : i64, tpu.core_type = #tpu.core_type<tc>, window_params = [{transform_indices = @transform_0, window_bounds = array<i64: 1, 4, 2, 128>}, {transform_indices = @transform_1, window_bounds = array<i64: 1, 2, 128>}, {transform_indices = @transform_2, window_bounds = array<i64: 1, 4, 2, 128>}, {transform_indices = @transform_3, window_bounds = array<i64: 1, 1, 18, 128>}]} {
    %c0_i32 = arith.constant 0 : i32
    %0 = arith.cmpi eq, %arg2, %c0_i32 : i32
    %1 = arith.extui %0 : i1 to i32
    %c0_i32_0 = arith.constant 0 : i32
    %2 = arith.cmpi ne, %1, %c0_i32_0 : i32
    scf.if %2 {
      %cst_190 = arith.constant 0.000000e+00 : f32
      %249 = vector.broadcast %cst_190 : f32 to vector<18x128xf32>
      %c0_191 = arith.constant 0 : index
      %c0_192 = arith.constant 0 : index
      %c0_193 = arith.constant 0 : index
      %c0_194 = arith.constant 0 : index
      %250 = vector.load %arg6[%c0_191, %c0_192, %c0_193, %c0_194] : memref<1x1x18x128xf32, #tpu.memory_space<vmem>>, vector<1x1x18x128xf32>
      %251 = vector.shape_cast %250 : vector<1x1x18x128xf32> to vector<18x128xf32>
      %252 = vector.shape_cast %249 : vector<18x128xf32> to vector<1x1x18x128xf32>
      tpu.vector_store %arg6[%c0_191, %c0_192, %c0_193, %c0_194], %252 {strides = array<i32>} : memref<1x1x18x128xf32, #tpu.memory_space<vmem>>, vector<1x1x18x128xf32>,
    } else {
    }
    %c0 = arith.constant 0 : index
    %c0_1 = arith.constant 0 : index
    %c0_2 = arith.constant 0 : index
    %3 = vector.load %arg4[%c0, %c0_1, %c0_2] : memref<1x2x128xbf16, #tpu.memory_space<vmem>>, vector<1x2x128xbf16>
    %4 = vector.shape_cast %3 : vector<1x2x128xbf16> to vector<2x128xbf16>
    %5 = arith.extf %4 : vector<2x128xbf16> to vector<2x128xf32>
    %c0_3 = arith.constant 0 : index
    %c0_4 = arith.constant 0 : index
    %c0_5 = arith.constant 0 : index
    %c0_6 = arith.constant 0 : index
    %6 = vector.load %arg3[%c0_3, %c0_4, %c0_5, %c0_6] : memref<1x4x2x128xf32, #tpu.memory_space<vmem>>, vector<1x1x2x128xf32>
    %7 = vector.shape_cast %6 : vector<1x1x2x128xf32> to vector<2x128xf32>
    %c0_7 = arith.constant 0 : index
    %c1 = arith.constant 1 : index
    %c0_8 = arith.constant 0 : index
    %c0_9 = arith.constant 0 : index
    %8 = vector.load %arg3[%c0_7, %c1, %c0_8, %c0_9] : memref<1x4x2x128xf32, #tpu.memory_space<vmem>>, vector<1x1x2x128xf32>
    %9 = vector.shape_cast %8 : vector<1x1x2x128xf32> to vector<2x128xf32>
    %c0_10 = arith.constant 0 : index
    %c2 = arith.constant 2 : index
    %c0_11 = arith.constant 0 : index
    %c0_12 = arith.constant 0 : index
    %10 = vector.load %arg3[%c0_10, %c2, %c0_11, %c0_12] : memref<1x4x2x128xf32, #tpu.memory_space<vmem>>, vector<1x1x2x128xf32>
    %11 = vector.shape_cast %10 : vector<1x1x2x128xf32> to vector<2x128xf32>
    %c0_13 = arith.constant 0 : index
    %c3 = arith.constant 3 : index
    %c0_14 = arith.constant 0 : index
    %c0_15 = arith.constant 0 : index
    %12 = vector.load %arg3[%c0_13, %c3, %c0_14, %c0_15] : memref<1x4x2x128xf32, #tpu.memory_space<vmem>>, vector<1x1x2x128xf32>
    %13 = vector.shape_cast %12 : vector<1x1x2x128xf32> to vector<2x128xf32>
    %14 = arith.maximumf %7, %9 : vector<2x128xf32>
    %15 = arith.maximumf %14, %11 : vector<2x128xf32>
    %16 = arith.maximumf %15, %13 : vector<2x128xf32>
    %17 = arith.subf %7, %16 : vector<2x128xf32>
    %18 = arith.subf %9, %16 : vector<2x128xf32>
    %19 = arith.subf %11, %16 : vector<2x128xf32>
    %20 = arith.subf %13, %16 : vector<2x128xf32>
    %21 = math.exp %17 : vector<2x128xf32>
    %22 = math.exp %18 : vector<2x128xf32>
    %23 = math.exp %19 : vector<2x128xf32>
    %24 = math.exp %20 : vector<2x128xf32>
    %25 = arith.addf %21, %22 : vector<2x128xf32>
    %26 = arith.addf %25, %23 : vector<2x128xf32>
    %27 = arith.addf %26, %24 : vector<2x128xf32>
    %cst = arith.constant 1.000000e+00 : f32
    %28 = vector.broadcast %cst : f32 to vector<2x128xf32>
    %29 = arith.divf %28, %27 : vector<2x128xf32>
    %30 = math.log %27 : vector<2x128xf32>
    %cst_16 = arith.constant 2.550000e+02 : f32
    %31 = vector.broadcast %cst_16 : f32 to vector<2x128xf32>
    %32 = arith.cmpf oeq, %5, %31 : vector<2x128xf32>
    %33 = arith.extui %32 : vector<2x128xi1> to vector<2x128xi32>
    %34 = arith.sitofp %33 : vector<2x128xi32> to vector<2x128xf32>
    %cst_17 = arith.constant 1.000000e+00 : f32
    %35 = vector.broadcast %cst_17 : f32 to vector<2x128xf32>
    %36 = arith.subf %35, %34 : vector<2x128xf32>
    %37 = arith.mulf %21, %29 : vector<2x128xf32>
    %cst_18 = arith.constant 0.000000e+00 : f32
    %38 = vector.broadcast %cst_18 : f32 to vector<2x128xf32>
    %39 = arith.cmpf oeq, %5, %38 : vector<2x128xf32>
    %40 = arith.extui %39 : vector<2x128xi1> to vector<2x128xi32>
    %41 = arith.sitofp %40 : vector<2x128xi32> to vector<2x128xf32>
    %42 = arith.addf %41, %34 : vector<2x128xf32>
    %43 = arith.mulf %37, %42 : vector<2x128xf32>
    %cst_19 = arith.constant dense<0.000000e+00> : vector<128xf32>
    %44 = vector.multi_reduction <add>, %43, %cst_19 [0] : vector<2x128xf32> to vector<128xf32>
    %45 = vector.shape_cast %44 : vector<128xf32> to vector<1x128xf32>
    %c0_20 = arith.constant 0 : index
    %c0_21 = arith.constant 0 : index
    %c0_22 = arith.constant 0 : index
    %c0_23 = arith.constant 0 : index
    %46 = vector.load %arg6[%c0_20, %c0_21, %c0_22, %c0_23] : memref<1x1x18x128xf32, #tpu.memory_space<vmem>>, vector<1x1x1x128xf32>
    %47 = vector.shape_cast %46 : vector<1x1x1x128xf32> to vector<1x128xf32>
    %48 = arith.addf %47, %45 : vector<1x128xf32>
    %c0_24 = arith.constant 0 : index
    %c0_25 = arith.constant 0 : index
    %c0_26 = arith.constant 0 : index
    %c0_27 = arith.constant 0 : index
    %49 = vector.load %arg6[%c0_24, %c0_25, %c0_26, %c0_27] : memref<1x1x18x128xf32, #tpu.memory_space<vmem>>, vector<1x1x1x128xf32>
    %50 = vector.shape_cast %49 : vector<1x1x1x128xf32> to vector<1x128xf32>
    %51 = vector.shape_cast %48 : vector<1x128xf32> to vector<1x1x1x128xf32>
    tpu.vector_store %arg6[%c0_24, %c0_25, %c0_26, %c0_27], %51 {strides = array<i32>} : memref<1x1x18x128xf32, #tpu.memory_space<vmem>>, vector<1x1x1x128xf32>,
    %cst_28 = arith.constant dense<0.000000e+00> : vector<128xf32>
    %52 = vector.multi_reduction <add>, %37, %cst_28 [0] : vector<2x128xf32> to vector<128xf32>
    %53 = vector.shape_cast %52 : vector<128xf32> to vector<1x128xf32>
    %c0_29 = arith.constant 0 : index
    %c0_30 = arith.constant 0 : index
    %c4 = arith.constant 4 : index
    %c0_31 = arith.constant 0 : index
    %54 = vector.load %arg6[%c0_29, %c0_30, %c4, %c0_31] : memref<1x1x18x128xf32, #tpu.memory_space<vmem>>, vector<1x1x1x128xf32>
    %55 = vector.shape_cast %54 : vector<1x1x1x128xf32> to vector<1x128xf32>
    %56 = arith.addf %55, %53 : vector<1x128xf32>
    %c0_32 = arith.constant 0 : index
    %c0_33 = arith.constant 0 : index
    %c4_34 = arith.constant 4 : index
    %c0_35 = arith.constant 0 : index
    %57 = vector.load %arg6[%c0_32, %c0_33, %c4_34, %c0_35] : memref<1x1x18x128xf32, #tpu.memory_space<vmem>>, vector<1x1x1x128xf32>
    %58 = vector.shape_cast %57 : vector<1x1x1x128xf32> to vector<1x128xf32>
    %59 = vector.shape_cast %56 : vector<1x128xf32> to vector<1x1x1x128xf32>
    tpu.vector_store %arg6[%c0_32, %c0_33, %c4_34, %c0_35], %59 {strides = array<i32>} : memref<1x1x18x128xf32, #tpu.memory_space<vmem>>, vector<1x1x1x128xf32>,
    %cst_36 = arith.constant dense<0.000000e+00> : vector<128xf32>
    %60 = vector.multi_reduction <add>, %42, %cst_36 [0] : vector<2x128xf32> to vector<128xf32>
    %61 = vector.shape_cast %60 : vector<128xf32> to vector<1x128xf32>
    %c0_37 = arith.constant 0 : index
    %c0_38 = arith.constant 0 : index
    %c8 = arith.constant 8 : index
    %c0_39 = arith.constant 0 : index
    %62 = vector.load %arg6[%c0_37, %c0_38, %c8, %c0_39] : memref<1x1x18x128xf32, #tpu.memory_space<vmem>>, vector<1x1x1x128xf32>
    %63 = vector.shape_cast %62 : vector<1x1x1x128xf32> to vector<1x128xf32>
    %64 = arith.addf %63, %61 : vector<1x128xf32>
    %c0_40 = arith.constant 0 : index
    %c0_41 = arith.constant 0 : index
    %c8_42 = arith.constant 8 : index
    %c0_43 = arith.constant 0 : index
    %65 = vector.load %arg6[%c0_40, %c0_41, %c8_42, %c0_43] : memref<1x1x18x128xf32, #tpu.memory_space<vmem>>, vector<1x1x1x128xf32>
    %66 = vector.shape_cast %65 : vector<1x1x1x128xf32> to vector<1x128xf32>
    %67 = vector.shape_cast %64 : vector<1x128xf32> to vector<1x1x1x128xf32>
    tpu.vector_store %arg6[%c0_40, %c0_41, %c8_42, %c0_43], %67 {strides = array<i32>} : memref<1x1x18x128xf32, #tpu.memory_space<vmem>>, vector<1x1x1x128xf32>,
    %68 = arith.subf %17, %30 : vector<2x128xf32>
    %cst_44 = arith.constant 1.000000e+00 : f32
    %69 = vector.broadcast %cst_44 : f32 to vector<2x128xf32>
    %70 = arith.subf %69, %37 : vector<2x128xf32>
    %71 = arith.mulf %70, %70 : vector<2x128xf32>
    %72 = arith.mulf %71, %68 : vector<2x128xf32>
    %73 = arith.mulf %41, %72 : vector<2x128xf32>
    %cst_45 = arith.constant dense<0.000000e+00> : vector<128xf32>
    %74 = vector.multi_reduction <add>, %73, %cst_45 [0] : vector<2x128xf32> to vector<128xf32>
    %75 = vector.shape_cast %74 : vector<128xf32> to vector<1x128xf32>
    %c0_46 = arith.constant 0 : index
    %c0_47 = arith.constant 0 : index
    %c12 = arith.constant 12 : index
    %c0_48 = arith.constant 0 : index
    %76 = vector.load %arg6[%c0_46, %c0_47, %c12, %c0_48] : memref<1x1x18x128xf32, #tpu.memory_space<vmem>>, vector<1x1x1x128xf32>
    %77 = vector.shape_cast %76 : vector<1x1x1x128xf32> to vector<1x128xf32>
    %78 = arith.addf %77, %75 : vector<1x128xf32>
    %c0_49 = arith.constant 0 : index
    %c0_50 = arith.constant 0 : index
    %c12_51 = arith.constant 12 : index
    %c0_52 = arith.constant 0 : index
    %79 = vector.load %arg6[%c0_49, %c0_50, %c12_51, %c0_52] : memref<1x1x18x128xf32, #tpu.memory_space<vmem>>, vector<1x1x1x128xf32>
    %80 = vector.shape_cast %79 : vector<1x1x1x128xf32> to vector<1x128xf32>
    %81 = vector.shape_cast %78 : vector<1x128xf32> to vector<1x1x1x128xf32>
    tpu.vector_store %arg6[%c0_49, %c0_50, %c12_51, %c0_52], %81 {strides = array<i32>} : memref<1x1x18x128xf32, #tpu.memory_space<vmem>>, vector<1x1x1x128xf32>,
    %c0_53 = arith.constant 0 : index
    %c0_54 = arith.constant 0 : index
    %c0_55 = arith.constant 0 : index
    %c0_56 = arith.constant 0 : index
    %82 = vector.load %arg5[%c0_53, %c0_54, %c0_55, %c0_56] : memref<1x4x2x128xbf16, #tpu.memory_space<vmem>>, vector<1x1x2x128xbf16>
    %83 = vector.shape_cast %82 : vector<1x1x2x128xbf16> to vector<2x128xbf16>
    %84 = arith.extf %83 : vector<2x128xbf16> to vector<2x128xf32>
    %85 = arith.mulf %37, %84 : vector<2x128xf32>
    %86 = arith.mulf %22, %29 : vector<2x128xf32>
    %cst_57 = arith.constant 1.000000e+00 : f32
    %87 = vector.broadcast %cst_57 : f32 to vector<2x128xf32>
    %88 = arith.cmpf oeq, %5, %87 : vector<2x128xf32>
    %89 = arith.extui %88 : vector<2x128xi1> to vector<2x128xi32>
    %90 = arith.sitofp %89 : vector<2x128xi32> to vector<2x128xf32>
    %91 = arith.mulf %86, %90 : vector<2x128xf32>
    %cst_58 = arith.constant dense<0.000000e+00> : vector<128xf32>
    %92 = vector.multi_reduction <add>, %91, %cst_58 [0] : vector<2x128xf32> to vector<128xf32>
    %93 = vector.shape_cast %92 : vector<128xf32> to vector<1x128xf32>
    %c0_59 = arith.constant 0 : index
    %c0_60 = arith.constant 0 : index
    %c1_61 = arith.constant 1 : index
    %c0_62 = arith.constant 0 : index
    %94 = vector.load %arg6[%c0_59, %c0_60, %c1_61, %c0_62] : memref<1x1x18x128xf32, #tpu.memory_space<vmem>>, vector<1x1x1x128xf32>
    %95 = vector.shape_cast %94 : vector<1x1x1x128xf32> to vector<1x128xf32>
    %96 = arith.addf %95, %93 : vector<1x128xf32>
    %c0_63 = arith.constant 0 : index
    %c0_64 = arith.constant 0 : index
    %c1_65 = arith.constant 1 : index
    %c0_66 = arith.constant 0 : index
    %97 = vector.load %arg6[%c0_63, %c0_64, %c1_65, %c0_66] : memref<1x1x18x128xf32, #tpu.memory_space<vmem>>, vector<1x1x1x128xf32>
    %98 = vector.shape_cast %97 : vector<1x1x1x128xf32> to vector<1x128xf32>
    %99 = vector.shape_cast %96 : vector<1x128xf32> to vector<1x1x1x128xf32>
    tpu.vector_store %arg6[%c0_63, %c0_64, %c1_65, %c0_66], %99 {strides = array<i32>} : memref<1x1x18x128xf32, #tpu.memory_space<vmem>>, vector<1x1x1x128xf32>,
    %cst_67 = arith.constant dense<0.000000e+00> : vector<128xf32>
    %100 = vector.multi_reduction <add>, %86, %cst_67 [0] : vector<2x128xf32> to vector<128xf32>
    %101 = vector.shape_cast %100 : vector<128xf32> to vector<1x128xf32>
    %c0_68 = arith.constant 0 : index
    %c0_69 = arith.constant 0 : index
    %c5 = arith.constant 5 : index
    %c0_70 = arith.constant 0 : index
    %102 = vector.load %arg6[%c0_68, %c0_69, %c5, %c0_70] : memref<1x1x18x128xf32, #tpu.memory_space<vmem>>, vector<1x1x1x128xf32>
    %103 = vector.shape_cast %102 : vector<1x1x1x128xf32> to vector<1x128xf32>
    %104 = arith.addf %103, %101 : vector<1x128xf32>
    %c0_71 = arith.constant 0 : index
    %c0_72 = arith.constant 0 : index
    %c5_73 = arith.constant 5 : index
    %c0_74 = arith.constant 0 : index
    %105 = vector.load %arg6[%c0_71, %c0_72, %c5_73, %c0_74] : memref<1x1x18x128xf32, #tpu.memory_space<vmem>>, vector<1x1x1x128xf32>
    %106 = vector.shape_cast %105 : vector<1x1x1x128xf32> to vector<1x128xf32>
    %107 = vector.shape_cast %104 : vector<1x128xf32> to vector<1x1x1x128xf32>
    tpu.vector_store %arg6[%c0_71, %c0_72, %c5_73, %c0_74], %107 {strides = array<i32>} : memref<1x1x18x128xf32, #tpu.memory_space<vmem>>, vector<1x1x1x128xf32>,
    %cst_75 = arith.constant dense<0.000000e+00> : vector<128xf32>
    %108 = vector.multi_reduction <add>, %90, %cst_75 [0] : vector<2x128xf32> to vector<128xf32>
    %109 = vector.shape_cast %108 : vector<128xf32> to vector<1x128xf32>
    %c0_76 = arith.constant 0 : index
    %c0_77 = arith.constant 0 : index
    %c9 = arith.constant 9 : index
    %c0_78 = arith.constant 0 : index
    %110 = vector.load %arg6[%c0_76, %c0_77, %c9, %c0_78] : memref<1x1x18x128xf32, #tpu.memory_space<vmem>>, vector<1x1x1x128xf32>
    %111 = vector.shape_cast %110 : vector<1x1x1x128xf32> to vector<1x128xf32>
    %112 = arith.addf %111, %109 : vector<1x128xf32>
    %c0_79 = arith.constant 0 : index
    %c0_80 = arith.constant 0 : index
    %c9_81 = arith.constant 9 : index
    %c0_82 = arith.constant 0 : index
    %113 = vector.load %arg6[%c0_79, %c0_80, %c9_81, %c0_82] : memref<1x1x18x128xf32, #tpu.memory_space<vmem>>, vector<1x1x1x128xf32>
    %114 = vector.shape_cast %113 : vector<1x1x1x128xf32> to vector<1x128xf32>
    %115 = vector.shape_cast %112 : vector<1x128xf32> to vector<1x1x1x128xf32>
    tpu.vector_store %arg6[%c0_79, %c0_80, %c9_81, %c0_82], %115 {strides = array<i32>} : memref<1x1x18x128xf32, #tpu.memory_space<vmem>>, vector<1x1x1x128xf32>,
    %116 = arith.subf %18, %30 : vector<2x128xf32>
    %cst_83 = arith.constant 1.000000e+00 : f32
    %117 = vector.broadcast %cst_83 : f32 to vector<2x128xf32>
    %118 = arith.subf %117, %86 : vector<2x128xf32>
    %119 = arith.mulf %118, %118 : vector<2x128xf32>
    %120 = arith.mulf %119, %116 : vector<2x128xf32>
    %121 = arith.mulf %90, %120 : vector<2x128xf32>
    %cst_84 = arith.constant dense<0.000000e+00> : vector<128xf32>
    %122 = vector.multi_reduction <add>, %121, %cst_84 [0] : vector<2x128xf32> to vector<128xf32>
    %123 = vector.shape_cast %122 : vector<128xf32> to vector<1x128xf32>
    %c0_85 = arith.constant 0 : index
    %c0_86 = arith.constant 0 : index
    %c13 = arith.constant 13 : index
    %c0_87 = arith.constant 0 : index
    %124 = vector.load %arg6[%c0_85, %c0_86, %c13, %c0_87] : memref<1x1x18x128xf32, #tpu.memory_space<vmem>>, vector<1x1x1x128xf32>
    %125 = vector.shape_cast %124 : vector<1x1x1x128xf32> to vector<1x128xf32>
    %126 = arith.addf %125, %123 : vector<1x128xf32>
    %c0_88 = arith.constant 0 : index
    %c0_89 = arith.constant 0 : index
    %c13_90 = arith.constant 13 : index
    %c0_91 = arith.constant 0 : index
    %127 = vector.load %arg6[%c0_88, %c0_89, %c13_90, %c0_91] : memref<1x1x18x128xf32, #tpu.memory_space<vmem>>, vector<1x1x1x128xf32>
    %128 = vector.shape_cast %127 : vector<1x1x1x128xf32> to vector<1x128xf32>
    %129 = vector.shape_cast %126 : vector<1x128xf32> to vector<1x1x1x128xf32>
    tpu.vector_store %arg6[%c0_88, %c0_89, %c13_90, %c0_91], %129 {strides = array<i32>} : memref<1x1x18x128xf32, #tpu.memory_space<vmem>>, vector<1x1x1x128xf32>,
    %c0_92 = arith.constant 0 : index
    %c1_93 = arith.constant 1 : index
    %c0_94 = arith.constant 0 : index
    %c0_95 = arith.constant 0 : index
    %130 = vector.load %arg5[%c0_92, %c1_93, %c0_94, %c0_95] : memref<1x4x2x128xbf16, #tpu.memory_space<vmem>>, vector<1x1x2x128xbf16>
    %131 = vector.shape_cast %130 : vector<1x1x2x128xbf16> to vector<2x128xbf16>
    %132 = arith.extf %131 : vector<2x128xbf16> to vector<2x128xf32>
    %133 = arith.mulf %86, %132 : vector<2x128xf32>
    %134 = arith.addf %85, %133 : vector<2x128xf32>
    %135 = arith.mulf %23, %29 : vector<2x128xf32>
    %cst_96 = arith.constant 2.000000e+00 : f32
    %136 = vector.broadcast %cst_96 : f32 to vector<2x128xf32>
    %137 = arith.cmpf oeq, %5, %136 : vector<2x128xf32>
    %138 = arith.extui %137 : vector<2x128xi1> to vector<2x128xi32>
    %139 = arith.sitofp %138 : vector<2x128xi32> to vector<2x128xf32>
    %140 = arith.mulf %135, %139 : vector<2x128xf32>
    %cst_97 = arith.constant dense<0.000000e+00> : vector<128xf32>
    %141 = vector.multi_reduction <add>, %140, %cst_97 [0] : vector<2x128xf32> to vector<128xf32>
    %142 = vector.shape_cast %141 : vector<128xf32> to vector<1x128xf32>
    %c0_98 = arith.constant 0 : index
    %c0_99 = arith.constant 0 : index
    %c2_100 = arith.constant 2 : index
    %c0_101 = arith.constant 0 : index
    %143 = vector.load %arg6[%c0_98, %c0_99, %c2_100, %c0_101] : memref<1x1x18x128xf32, #tpu.memory_space<vmem>>, vector<1x1x1x128xf32>
    %144 = vector.shape_cast %143 : vector<1x1x1x128xf32> to vector<1x128xf32>
    %145 = arith.addf %144, %142 : vector<1x128xf32>
    %c0_102 = arith.constant 0 : index
    %c0_103 = arith.constant 0 : index
    %c2_104 = arith.constant 2 : index
    %c0_105 = arith.constant 0 : index
    %146 = vector.load %arg6[%c0_102, %c0_103, %c2_104, %c0_105] : memref<1x1x18x128xf32, #tpu.memory_space<vmem>>, vector<1x1x1x128xf32>
    %147 = vector.shape_cast %146 : vector<1x1x1x128xf32> to vector<1x128xf32>
    %148 = vector.shape_cast %145 : vector<1x128xf32> to vector<1x1x1x128xf32>
    tpu.vector_store %arg6[%c0_102, %c0_103, %c2_104, %c0_105], %148 {strides = array<i32>} : memref<1x1x18x128xf32, #tpu.memory_space<vmem>>, vector<1x1x1x128xf32>,
    %cst_106 = arith.constant dense<0.000000e+00> : vector<128xf32>
    %149 = vector.multi_reduction <add>, %135, %cst_106 [0] : vector<2x128xf32> to vector<128xf32>
    %150 = vector.shape_cast %149 : vector<128xf32> to vector<1x128xf32>
    %c0_107 = arith.constant 0 : index
    %c0_108 = arith.constant 0 : index
    %c6 = arith.constant 6 : index
    %c0_109 = arith.constant 0 : index
    %151 = vector.load %arg6[%c0_107, %c0_108, %c6, %c0_109] : memref<1x1x18x128xf32, #tpu.memory_space<vmem>>, vector<1x1x1x128xf32>
    %152 = vector.shape_cast %151 : vector<1x1x1x128xf32> to vector<1x128xf32>
    %153 = arith.addf %152, %150 : vector<1x128xf32>
    %c0_110 = arith.constant 0 : index
    %c0_111 = arith.constant 0 : index
    %c6_112 = arith.constant 6 : index
    %c0_113 = arith.constant 0 : index
    %154 = vector.load %arg6[%c0_110, %c0_111, %c6_112, %c0_113] : memref<1x1x18x128xf32, #tpu.memory_space<vmem>>, vector<1x1x1x128xf32>
    %155 = vector.shape_cast %154 : vector<1x1x1x128xf32> to vector<1x128xf32>
    %156 = vector.shape_cast %153 : vector<1x128xf32> to vector<1x1x1x128xf32>
    tpu.vector_store %arg6[%c0_110, %c0_111, %c6_112, %c0_113], %156 {strides = array<i32>} : memref<1x1x18x128xf32, #tpu.memory_space<vmem>>, vector<1x1x1x128xf32>,
    %cst_114 = arith.constant dense<0.000000e+00> : vector<128xf32>
    %157 = vector.multi_reduction <add>, %139, %cst_114 [0] : vector<2x128xf32> to vector<128xf32>
    %158 = vector.shape_cast %157 : vector<128xf32> to vector<1x128xf32>
    %c0_115 = arith.constant 0 : index
    %c0_116 = arith.constant 0 : index
    %c10 = arith.constant 10 : index
    %c0_117 = arith.constant 0 : index
    %159 = vector.load %arg6[%c0_115, %c0_116, %c10, %c0_117] : memref<1x1x18x128xf32, #tpu.memory_space<vmem>>, vector<1x1x1x128xf32>
    %160 = vector.shape_cast %159 : vector<1x1x1x128xf32> to vector<1x128xf32>
    %161 = arith.addf %160, %158 : vector<1x128xf32>
    %c0_118 = arith.constant 0 : index
    %c0_119 = arith.constant 0 : index
    %c10_120 = arith.constant 10 : index
    %c0_121 = arith.constant 0 : index
    %162 = vector.load %arg6[%c0_118, %c0_119, %c10_120, %c0_121] : memref<1x1x18x128xf32, #tpu.memory_space<vmem>>, vector<1x1x1x128xf32>
    %163 = vector.shape_cast %162 : vector<1x1x1x128xf32> to vector<1x128xf32>
    %164 = vector.shape_cast %161 : vector<1x128xf32> to vector<1x1x1x128xf32>
    tpu.vector_store %arg6[%c0_118, %c0_119, %c10_120, %c0_121], %164 {strides = array<i32>} : memref<1x1x18x128xf32, #tpu.memory_space<vmem>>, vector<1x1x1x128xf32>,
    %165 = arith.subf %19, %30 : vector<2x128xf32>
    %cst_122 = arith.constant 1.000000e+00 : f32
    %166 = vector.broadcast %cst_122 : f32 to vector<2x128xf32>
    %167 = arith.subf %166, %135 : vector<2x128xf32>
    %168 = arith.mulf %167, %167 : vector<2x128xf32>
    %169 = arith.mulf %168, %165 : vector<2x128xf32>
    %170 = arith.mulf %139, %169 : vector<2x128xf32>
    %cst_123 = arith.constant dense<0.000000e+00> : vector<128xf32>
    %171 = vector.multi_reduction <add>, %170, %cst_123 [0] : vector<2x128xf32> to vector<128xf32>
    %172 = vector.shape_cast %171 : vector<128xf32> to vector<1x128xf32>
    %c0_124 = arith.constant 0 : index
    %c0_125 = arith.constant 0 : index
    %c14 = arith.constant 14 : index
    %c0_126 = arith.constant 0 : index
    %173 = vector.load %arg6[%c0_124, %c0_125, %c14, %c0_126] : memref<1x1x18x128xf32, #tpu.memory_space<vmem>>, vector<1x1x1x128xf32>
    %174 = vector.shape_cast %173 : vector<1x1x1x128xf32> to vector<1x128xf32>
    %175 = arith.addf %174, %172 : vector<1x128xf32>
    %c0_127 = arith.constant 0 : index
    %c0_128 = arith.constant 0 : index
    %c14_129 = arith.constant 14 : index
    %c0_130 = arith.constant 0 : index
    %176 = vector.load %arg6[%c0_127, %c0_128, %c14_129, %c0_130] : memref<1x1x18x128xf32, #tpu.memory_space<vmem>>, vector<1x1x1x128xf32>
    %177 = vector.shape_cast %176 : vector<1x1x1x128xf32> to vector<1x128xf32>
    %178 = vector.shape_cast %175 : vector<1x128xf32> to vector<1x1x1x128xf32>
    tpu.vector_store %arg6[%c0_127, %c0_128, %c14_129, %c0_130], %178 {strides = array<i32>} : memref<1x1x18x128xf32, #tpu.memory_space<vmem>>, vector<1x1x1x128xf32>,
    %c0_131 = arith.constant 0 : index
    %c2_132 = arith.constant 2 : index
    %c0_133 = arith.constant 0 : index
    %c0_134 = arith.constant 0 : index
    %179 = vector.load %arg5[%c0_131, %c2_132, %c0_133, %c0_134] : memref<1x4x2x128xbf16, #tpu.memory_space<vmem>>, vector<1x1x2x128xbf16>
    %180 = vector.shape_cast %179 : vector<1x1x2x128xbf16> to vector<2x128xbf16>
    %181 = arith.extf %180 : vector<2x128xbf16> to vector<2x128xf32>
    %182 = arith.mulf %135, %181 : vector<2x128xf32>
    %183 = arith.addf %134, %182 : vector<2x128xf32>
    %184 = arith.mulf %24, %29 : vector<2x128xf32>
    %cst_135 = arith.constant 3.000000e+00 : f32
    %185 = vector.broadcast %cst_135 : f32 to vector<2x128xf32>
    %186 = arith.cmpf oeq, %5, %185 : vector<2x128xf32>
    %187 = arith.extui %186 : vector<2x128xi1> to vector<2x128xi32>
    %188 = arith.sitofp %187 : vector<2x128xi32> to vector<2x128xf32>
    %189 = arith.mulf %184, %188 : vector<2x128xf32>
    %cst_136 = arith.constant dense<0.000000e+00> : vector<128xf32>
    %190 = vector.multi_reduction <add>, %189, %cst_136 [0] : vector<2x128xf32> to vector<128xf32>
    %191 = vector.shape_cast %190 : vector<128xf32> to vector<1x128xf32>
    %c0_137 = arith.constant 0 : index
    %c0_138 = arith.constant 0 : index
    %c3_139 = arith.constant 3 : index
    %c0_140 = arith.constant 0 : index
    %192 = vector.load %arg6[%c0_137, %c0_138, %c3_139, %c0_140] : memref<1x1x18x128xf32, #tpu.memory_space<vmem>>, vector<1x1x1x128xf32>
    %193 = vector.shape_cast %192 : vector<1x1x1x128xf32> to vector<1x128xf32>
    %194 = arith.addf %193, %191 : vector<1x128xf32>
    %c0_141 = arith.constant 0 : index
    %c0_142 = arith.constant 0 : index
    %c3_143 = arith.constant 3 : index
    %c0_144 = arith.constant 0 : index
    %195 = vector.load %arg6[%c0_141, %c0_142, %c3_143, %c0_144] : memref<1x1x18x128xf32, #tpu.memory_space<vmem>>, vector<1x1x1x128xf32>
    %196 = vector.shape_cast %195 : vector<1x1x1x128xf32> to vector<1x128xf32>
    %197 = vector.shape_cast %194 : vector<1x128xf32> to vector<1x1x1x128xf32>
    tpu.vector_store %arg6[%c0_141, %c0_142, %c3_143, %c0_144], %197 {strides = array<i32>} : memref<1x1x18x128xf32, #tpu.memory_space<vmem>>, vector<1x1x1x128xf32>,
    %cst_145 = arith.constant dense<0.000000e+00> : vector<128xf32>
    %198 = vector.multi_reduction <add>, %184, %cst_145 [0] : vector<2x128xf32> to vector<128xf32>
    %199 = vector.shape_cast %198 : vector<128xf32> to vector<1x128xf32>
    %c0_146 = arith.constant 0 : index
    %c0_147 = arith.constant 0 : index
    %c7 = arith.constant 7 : index
    %c0_148 = arith.constant 0 : index
    %200 = vector.load %arg6[%c0_146, %c0_147, %c7, %c0_148] : memref<1x1x18x128xf32, #tpu.memory_space<vmem>>, vector<1x1x1x128xf32>
    %201 = vector.shape_cast %200 : vector<1x1x1x128xf32> to vector<1x128xf32>
    %202 = arith.addf %201, %199 : vector<1x128xf32>
    %c0_149 = arith.constant 0 : index
    %c0_150 = arith.constant 0 : index
    %c7_151 = arith.constant 7 : index
    %c0_152 = arith.constant 0 : index
    %203 = vector.load %arg6[%c0_149, %c0_150, %c7_151, %c0_152] : memref<1x1x18x128xf32, #tpu.memory_space<vmem>>, vector<1x1x1x128xf32>
    %204 = vector.shape_cast %203 : vector<1x1x1x128xf32> to vector<1x128xf32>
    %205 = vector.shape_cast %202 : vector<1x128xf32> to vector<1x1x1x128xf32>
    tpu.vector_store %arg6[%c0_149, %c0_150, %c7_151, %c0_152], %205 {strides = array<i32>} : memref<1x1x18x128xf32, #tpu.memory_space<vmem>>, vector<1x1x1x128xf32>,
    %cst_153 = arith.constant dense<0.000000e+00> : vector<128xf32>
    %206 = vector.multi_reduction <add>, %188, %cst_153 [0] : vector<2x128xf32> to vector<128xf32>
    %207 = vector.shape_cast %206 : vector<128xf32> to vector<1x128xf32>
    %c0_154 = arith.constant 0 : index
    %c0_155 = arith.constant 0 : index
    %c11 = arith.constant 11 : index
    %c0_156 = arith.constant 0 : index
    %208 = vector.load %arg6[%c0_154, %c0_155, %c11, %c0_156] : memref<1x1x18x128xf32, #tpu.memory_space<vmem>>, vector<1x1x1x128xf32>
    %209 = vector.shape_cast %208 : vector<1x1x1x128xf32> to vector<1x128xf32>
    %210 = arith.addf %209, %207 : vector<1x128xf32>
    %c0_157 = arith.constant 0 : index
    %c0_158 = arith.constant 0 : index
    %c11_159 = arith.constant 11 : index
    %c0_160 = arith.constant 0 : index
    %211 = vector.load %arg6[%c0_157, %c0_158, %c11_159, %c0_160] : memref<1x1x18x128xf32, #tpu.memory_space<vmem>>, vector<1x1x1x128xf32>
    %212 = vector.shape_cast %211 : vector<1x1x1x128xf32> to vector<1x128xf32>
    %213 = vector.shape_cast %210 : vector<1x128xf32> to vector<1x1x1x128xf32>
    tpu.vector_store %arg6[%c0_157, %c0_158, %c11_159, %c0_160], %213 {strides = array<i32>} : memref<1x1x18x128xf32, #tpu.memory_space<vmem>>, vector<1x1x1x128xf32>,
    %214 = arith.subf %20, %30 : vector<2x128xf32>
    %cst_161 = arith.constant 1.000000e+00 : f32
    %215 = vector.broadcast %cst_161 : f32 to vector<2x128xf32>
    %216 = arith.subf %215, %184 : vector<2x128xf32>
    %217 = arith.mulf %216, %216 : vector<2x128xf32>
    %218 = arith.mulf %217, %214 : vector<2x128xf32>
    %219 = arith.mulf %188, %218 : vector<2x128xf32>
    %cst_162 = arith.constant dense<0.000000e+00> : vector<128xf32>
    %220 = vector.multi_reduction <add>, %219, %cst_162 [0] : vector<2x128xf32> to vector<128xf32>
    %221 = vector.shape_cast %220 : vector<128xf32> to vector<1x128xf32>
    %c0_163 = arith.constant 0 : index
    %c0_164 = arith.constant 0 : index
    %c15 = arith.constant 15 : index
    %c0_165 = arith.constant 0 : index
    %222 = vector.load %arg6[%c0_163, %c0_164, %c15, %c0_165] : memref<1x1x18x128xf32, #tpu.memory_space<vmem>>, vector<1x1x1x128xf32>
    %223 = vector.shape_cast %222 : vector<1x1x1x128xf32> to vector<1x128xf32>
    %224 = arith.addf %223, %221 : vector<1x128xf32>
    %c0_166 = arith.constant 0 : index
    %c0_167 = arith.constant 0 : index
    %c15_168 = arith.constant 15 : index
    %c0_169 = arith.constant 0 : index
    %225 = vector.load %arg6[%c0_166, %c0_167, %c15_168, %c0_169] : memref<1x1x18x128xf32, #tpu.memory_space<vmem>>, vector<1x1x1x128xf32>
    %226 = vector.shape_cast %225 : vector<1x1x1x128xf32> to vector<1x128xf32>
    %227 = vector.shape_cast %224 : vector<1x128xf32> to vector<1x1x1x128xf32>
    tpu.vector_store %arg6[%c0_166, %c0_167, %c15_168, %c0_169], %227 {strides = array<i32>} : memref<1x1x18x128xf32, #tpu.memory_space<vmem>>, vector<1x1x1x128xf32>,
    %c0_170 = arith.constant 0 : index
    %c3_171 = arith.constant 3 : index
    %c0_172 = arith.constant 0 : index
    %c0_173 = arith.constant 0 : index
    %228 = vector.load %arg5[%c0_170, %c3_171, %c0_172, %c0_173] : memref<1x4x2x128xbf16, #tpu.memory_space<vmem>>, vector<1x1x2x128xbf16>
    %229 = vector.shape_cast %228 : vector<1x1x2x128xbf16> to vector<2x128xbf16>
    %230 = arith.extf %229 : vector<2x128xbf16> to vector<2x128xf32>
    %231 = arith.mulf %184, %230 : vector<2x128xf32>
    %232 = arith.addf %183, %231 : vector<2x128xf32>
    %cst_174 = arith.constant dense<0.000000e+00> : vector<128xf32>
    %233 = vector.multi_reduction <add>, %36, %cst_174 [0] : vector<2x128xf32> to vector<128xf32>
    %234 = vector.shape_cast %233 : vector<128xf32> to vector<1x128xf32>
    %c0_175 = arith.constant 0 : index
    %c0_176 = arith.constant 0 : index
    %c16 = arith.constant 16 : index
    %c0_177 = arith.constant 0 : index
    %235 = vector.load %arg6[%c0_175, %c0_176, %c16, %c0_177] : memref<1x1x18x128xf32, #tpu.memory_space<vmem>>, vector<1x1x1x128xf32>
    %236 = vector.shape_cast %235 : vector<1x1x1x128xf32> to vector<1x128xf32>
    %237 = arith.addf %236, %234 : vector<1x128xf32>
    %c0_178 = arith.constant 0 : index
    %c0_179 = arith.constant 0 : index
    %c16_180 = arith.constant 16 : index
    %c0_181 = arith.constant 0 : index
    %238 = vector.load %arg6[%c0_178, %c0_179, %c16_180, %c0_181] : memref<1x1x18x128xf32, #tpu.memory_space<vmem>>, vector<1x1x1x128xf32>
    %239 = vector.shape_cast %238 : vector<1x1x1x128xf32> to vector<1x128xf32>
    %240 = vector.shape_cast %237 : vector<1x128xf32> to vector<1x1x1x128xf32>
    tpu.vector_store %arg6[%c0_178, %c0_179, %c16_180, %c0_181], %240 {strides = array<i32>} : memref<1x1x18x128xf32, #tpu.memory_space<vmem>>, vector<1x1x1x128xf32>,
    %cst_182 = arith.constant dense<0.000000e+00> : vector<128xf32>
    %241 = vector.multi_reduction <add>, %232, %cst_182 [0] : vector<2x128xf32> to vector<128xf32>
    %242 = vector.shape_cast %241 : vector<128xf32> to vector<1x128xf32>
    %c0_183 = arith.constant 0 : index
    %c0_184 = arith.constant 0 : index
    %c17 = arith.constant 17 : index
    %c0_185 = arith.constant 0 : index
    %243 = vector.load %arg6[%c0_183, %c0_184, %c17, %c0_185] : memref<1x1x18x128xf32, #tpu.memory_space<vmem>>, vector<1x1x1x128xf32>
    %244 = vector.shape_cast %243 : vector<1x1x1x128xf32> to vector<1x128xf32>
    %245 = arith.addf %244, %242 : vector<1x128xf32>
    %c0_186 = arith.constant 0 : index
    %c0_187 = arith.constant 0 : index
    %c17_188 = arith.constant 17 : index
    %c0_189 = arith.constant 0 : index
    %246 = vector.load %arg6[%c0_186, %c0_187, %c17_188, %c0_189] : memref<1x1x18x128xf32, #tpu.memory_space<vmem>>, vector<1x1x1x128xf32>
    %247 = vector.shape_cast %246 : vector<1x1x1x128xf32> to vector<1x128xf32>
    %248 = vector.shape_cast %245 : vector<1x128xf32> to vector<1x1x1x128xf32>
    tpu.vector_store %arg6[%c0_186, %c0_187, %c17_188, %c0_189], %248 {strides = array<i32>} : memref<1x1x18x128xf32, #tpu.memory_space<vmem>>, vector<1x1x1x128xf32>,
    return
  }
  func.func @transform_0(%arg0: i32, %arg1: i32, %arg2: i32) -> (i32, i32, i32, i32) {
    %c1_i32 = arith.constant 1 : i32
    %0 = arith.muli %arg1, %c1_i32 : i32
    %1 = arith.addi %0, %arg2 : i32
    %c0_i32 = arith.constant 0 : i32
    %c0_i32_0 = arith.constant 0 : i32
    %c0_i32_1 = arith.constant 0 : i32
    return %arg0, %c0_i32, %1, %c0_i32_0 : i32, i32, i32, i32
  }
  func.func @transform_1(%arg0: i32, %arg1: i32, %arg2: i32) -> (i32, i32, i32) {
    %c1_i32 = arith.constant 1 : i32
    %0 = arith.muli %arg1, %c1_i32 : i32
    %1 = arith.addi %0, %arg2 : i32
    %c0_i32 = arith.constant 0 : i32
    %c0_i32_0 = arith.constant 0 : i32
    return %arg0, %1, %c0_i32 : i32, i32, i32
  }
  func.func @transform_2(%arg0: i32, %arg1: i32, %arg2: i32) -> (i32, i32, i32, i32) {
    %c1_i32 = arith.constant 1 : i32
    %0 = arith.muli %arg1, %c1_i32 : i32
    %1 = arith.addi %0, %arg2 : i32
    %c0_i32 = arith.constant 0 : i32
    %c0_i32_0 = arith.constant 0 : i32
    %c0_i32_1 = arith.constant 0 : i32
    return %arg0, %c0_i32, %1, %c0_i32_0 : i32, i32, i32, i32
  }
  func.func @transform_3(%arg0: i32, %arg1: i32, %arg2: i32) -> (i32, i32, i32, i32) {
    %c0_i32 = arith.constant 0 : i32
    %c0_i32_0 = arith.constant 0 : i32
    %c0_i32_1 = arith.constant 0 : i32
    return %arg0, %arg1, %c0_i32, %c0_i32_0 : i32, i32, i32, i32
  }
}

</mosaic_0001>

<llo_original>
// kernel: tpu_custom_call.1
$region0: #{tpu_custom_call.1}
  #allocation0 [shape = 'u32[]', space=smem, size = 0x4, offset = 0x4, fixed_abs, tag = 'smem constant byte address 0x4 - core index']
  #allocation1 [shape = 'u32[72,128]{1,0:T(1,128)}', space=vmem, size = 0x9000, scoped, tag = 'internal scratch']
  %s0 = inlined_call_operand.hbm [shape: f32[2,4,2,128], index: 0, kind: input, shape index: {}]
  %s1 = inlined_call_operand.hbm [shape: bf16[2,2,128], index: 1, kind: input, shape index: {}]
  %s2 = inlined_call_operand.hbm [shape: bf16[2,4,2,128], index: 2, kind: input, shape index: {}]
  %s3 = inlined_call_operand.vmem [shape: f32[2,1,18,128], index: 3, kind: output, shape index: {}]
  %s4 = sld [smem:[#allocation0]]
  $region61: #{tpu_custom_call.1} parent=0
    _
  %s6 = ssub.s32 1, %s4
  %s7 = scalar_select 0, %s6, %s4
  $region1: #{tpu_custom_call.1} parent=0
    #allocation2 [shape = 'u8[8192]{0}', space=vmem, size = 0x2000, scoped, tag = 'input window, operand 0']
    #allocation3 [shape = 's32[2]{0}', space=sflag, size = 0x8, scoped, tag = 'scoped memory for tpu_custom_call.1']
    #allocation4 [shape = 'u8[1024]{0}', space=vmem, size = 0x400, scoped, tag = 'input window, operand 1']
    #allocation5 [shape = 's32[2]{0}', space=sflag, size = 0x8, scoped, tag = 'scoped memory for tpu_custom_call.1']
    #allocation6 [shape = 'u8[4096]{0}', space=vmem, size = 0x1000, scoped, tag = 'input window, operand 2']
    %8 = vsyncpa [#allocation3], 0
    %s9 = scalar_lea.sflag [#allocation3], 1
    %10 = vsyncpa %s9, 0
    %11 = vsyncpa [#allocation5], 0
    %s12 = scalar_lea.sflag [#allocation5], 1
    %13 = vsyncpa %s12, 0
    loop: start=0, step=1, limit=4
    $region2: #{tpu_custom_call.1} parent=1 // loop_pre_header
      _
    $region3: #{tpu_custom_call.1} parent=1 // loop_header
      %s15 = sphi 0, %s19
      %p16 = scmp.ge.s32.totalorder %s15, 4
      %s22 = sphi 0, %s41
      %s23 = sphi 0, %s37
      %s24 = sphi 0, %s33
      %s25 = sphi 0, %s22
      %s26 = sphi 0, %s23
      %s27 = sphi 0, %s24
      %s28 = sphi 0, %s25
      %s29 = sphi 0, %s26
      %s30 = sphi 0, %s27
      %s48 = sphi 0, %s50
      %s51 = sphi 0, %s48
      %s52 = sphi 0, %s51
      %s68 = sphi 0, %s52
      %s78 = sphi 0, %s80
      %s81 = sphi 0, %s78
      %s82 = sphi 0, %s81
      %s98 = sphi 0, %s82
      %s108 = sphi 0, %s110
      %s111 = sphi 0, %s108
      %s112 = sphi 0, %s111
      %s128 = sphi 0, %s112
      %s136 = sphi 0, %s138
      %s139 = sphi 0, %s136
      %s140 = sphi 0, %s139
      %s156 = sphi 0, %s140
    $region4: #{tpu_custom_call.1} parent=1 // loop_header_branch
      %18 = sbr.rel (%p16) target = $region8
    $region5: #{tpu_custom_call.1} parent=1 // loop_body
      %s20 = ssub.s32 %s15, 1
      %s21 = ssub.s32 %s15, 2
      %s31 = sadd.s32 1, %s24
      %p32 = scmp.ge.s32.totalorder %s31, 1
      %s33 = scalar_select %p32, 0, %s31
      %s34 = sadd.s32 1, %s23
      %s35 = scalar_select %p32, %s34, %s23
      %p36 = scmp.ge.s32.totalorder %s35, 1
      %s37 = scalar_select %p36, 0, %s35
      %s38 = sadd.s32 1, %s22
      %s39 = scalar_select %p36, %s38, %s22
      %p40 = scmp.ge.s32.totalorder %s39, 2
      %s41 = scalar_select %p40, 0, %s39
      %s42 = sadd.s32 %s23, %s24
      %s43 = sadd.s32 %s37, %s33
      %s44 = ssub.s32 %s22, %s41
      %s45 = ssub.s32 %s42, %s43
      %s46 = sor.u32 %s44, %s45
      %p47 = scmp.eq.s32.totalorder %s46, 0
      %s49 = sadd.s32 %s48, 1
      %s50 = scalar_select %p47, %s48, %s49
      %p53 = pneg %p47
      %p54 = scmp.eq.s32.totalorder %s15, 1
      %p55 = por %p53, %p54
      %p56 = scmp.ne.s32.totalorder %s48, %s51
      %p57 = scmp.eq.s32.totalorder %s15, 0
      %p58 = por %p56, %p57
      %p59 = scmp.ne.s32.totalorder %s48, %s51
      %p60 = scmp.eq.s32.totalorder %s20, 1
      %p61 = por %p59, %p60
      %p62 = scmp.ne.s32.totalorder %s51, %s52
      %p63 = scmp.eq.s32.totalorder %s20, 0
      %p64 = por %p62, %p63
      %p65 = scmp.ne.s32.totalorder %s51, %s52
      %p66 = scmp.eq.s32.totalorder %s21, 1
      %p67 = por %p65, %p66
      %p69 = scmp.ne.s32.totalorder %s52, %s68
      %p70 = scmp.eq.s32.totalorder %s21, 0
      %p71 = por %p69, %p70
      %s72 = sadd.s32 %s23, %s24
      %s73 = sadd.s32 %s37, %s33
      %s74 = ssub.s32 %s22, %s41
      %s75 = ssub.s32 %s72, %s73
      %s76 = sor.u32 %s74, %s75
      %p77 = scmp.eq.s32.totalorder %s76, 0
      %s79 = sadd.s32 %s78, 1
      %s80 = scalar_select %p77, %s78, %s79
      %p83 = pneg %p77
      %p84 = scmp.eq.s32.totalorder %s15, 1
      %p85 = por %p83, %p84
      %p86 = scmp.ne.s32.totalorder %s78, %s81
      %p87 = scmp.eq.s32.totalorder %s15, 0
      %p88 = por %p86, %p87
      %p89 = scmp.ne.s32.totalorder %s78, %s81
      %p90 = scmp.eq.s32.totalorder %s20, 1
      %p91 = por %p89, %p90
      %p92 = scmp.ne.s32.totalorder %s81, %s82
      %p93 = scmp.eq.s32.totalorder %s20, 0
      %p94 = por %p92, %p93
      %p95 = scmp.ne.s32.totalorder %s81, %s82
      %p96 = scmp.eq.s32.totalorder %s21, 1
      %p97 = por %p95, %p96
      %p99 = scmp.ne.s32.totalorder %s82, %s98
      %p100 = scmp.eq.s32.totalorder %s21, 0
      %p101 = por %p99, %p100
      %s102 = sadd.s32 %s23, %s24
      %s103 = sadd.s32 %s37, %s33
      %s104 = ssub.s32 %s22, %s41
      %s105 = ssub.s32 %s102, %s103
      %s106 = sor.u32 %s104, %s105
      %p107 = scmp.eq.s32.totalorder %s106, 0
      %s109 = sadd.s32 %s108, 1
      %s110 = scalar_select %p107, %s108, %s109
      %p113 = pneg %p107
      %p114 = scmp.eq.s32.totalorder %s15, 1
      %p115 = por %p113, %p114
      %p116 = scmp.ne.s32.totalorder %s108, %s111
      %p117 = scmp.eq.s32.totalorder %s15, 0
      %p118 = por %p116, %p117
      %p119 = scmp.ne.s32.totalorder %s108, %s111
      %p120 = scmp.eq.s32.totalorder %s20, 1
      %p121 = por %p119, %p120
      %p122 = scmp.ne.s32.totalorder %s111, %s112
      %p123 = scmp.eq.s32.totalorder %s20, 0
      %p124 = por %p122, %p123
      %p125 = scmp.ne.s32.totalorder %s111, %s112
      %p126 = scmp.eq.s32.totalorder %s21, 1
      %p127 = por %p125, %p126
      %p129 = scmp.ne.s32.totalorder %s112, %s128
      %p130 = scmp.eq.s32.totalorder %s21, 0
      %p131 = por %p129, %p130
      %s132 = ssub.s32 %s22, %s41
      %s133 = ssub.s32 %s23, %s37
      %s134 = sor.u32 %s132, %s133
      %p135 = scmp.eq.s32.totalorder %s134, 0
      %s137 = sadd.s32 %s136, 1
      %s138 = scalar_select %p135, %s136, %s137
      %p141 = pneg %p135
      %p142 = scmp.eq.s32.totalorder %s15, 1
      %p143 = por %p141, %p142
      %p144 = scmp.ne.s32.totalorder %s136, %s139
      %p145 = scmp.eq.s32.totalorder %s15, 0
      %p146 = por %p144, %p145
      %p147 = scmp.ne.s32.totalorder %s136, %s139
      %p148 = scmp.eq.s32.totalorder %s20, 1
      %p149 = por %p147, %p148
      %p150 = scmp.ne.s32.totalorder %s139, %s140
      %p151 = scmp.eq.s32.totalorder %s20, 0
      %p152 = por %p150, %p151
      %p153 = scmp.ne.s32.totalorder %s139, %s140
      %p154 = scmp.eq.s32.totalorder %s21, 1
      %p155 = por %p153, %p154
      %p157 = scmp.ne.s32.totalorder %s140, %s156
      %p158 = scmp.eq.s32.totalorder %s21, 0
      %p159 = por %p157, %p158
      %p160 = scmp.le.s32.totalorder 1, %s15
      %p161 = scmp.lt.s32.totalorder %s15, 3
      %p162 = pnand %p160, %p161
      %p163 = pneg %p162
      // Predicated region
      $region9: #{tpu_custom_call.1} parent=5 // pred_check
        _
      $region10: #{tpu_custom_call.1} parent=5 // pred_check_branch
        %165 = sbr.rel (%p162) target = $region12
      $region11: #{tpu_custom_call.1} parent=5 // pred_region
        %s166 = ssub.s32 %s15, 1
      $region12: #{tpu_custom_call.1} parent=5 // pred_fallthru
        _
      %p167 = scmp.lt.s32.totalorder %s15, 2
      // Predicated region
      $region13: #{tpu_custom_call.1} parent=5 // pred_check
        %p168 = pneg %p167
      $region14: #{tpu_custom_call.1} parent=5 // pred_check_branch
        %170 = sbr.rel (%p168) target = $region16
      $region15: #{tpu_custom_call.1} parent=5 // pred_region
        // Predicated region
        $region17: #{tpu_custom_call.1} parent=15 // pred_check
          %p171 = pneg %p58
        $region18: #{tpu_custom_call.1} parent=15 // pred_check_branch
          %173 = sbr.rel (%p171) target = $region20
        $region19: #{tpu_custom_call.1} parent=15 // pred_region
          %s174 = sand.u32 %s48, 1
          %s175 = scalar_lea.sflag [#allocation3], %s174
          %s176 = sand.u32 %s48, 1
          %s177 = smul.addr %s176, 8
          %s178 = scalar_lea.vmem [#allocation2], %s177
          %s179 = sadd.s32 %s23, %s24
          %181 = vsyncadd %s175, 0
          %s182 = smul.addr %s22, 4
          %s183 = sadd.s32 %s179, %s182
          %s184 = smul.addr %s183, 2
          %s185 = scalar_lea.hbm %s0, %s184
          %s186 = sshll.u32 %s185, 4
          %s187 = int_to_ptr.hbm [resolvable:$true] %s186
          %s188 = sshll.u32 %s178, 4
          %s189 = int_to_ptr.vmem [resolvable:$true] %s188
          %194 = dma.hbm_to_vmem [thread:$0]  %s187, 128, %s189, %s175, 32, 32, 2
        $region20: #{tpu_custom_call.1} parent=15 // pred_fallthru
          _
        // Predicated region
        $region21: #{tpu_custom_call.1} parent=15 // pred_check
          %p195 = pneg %p88
        $region22: #{tpu_custom_call.1} parent=15 // pred_check_branch
          %197 = sbr.rel (%p195) target = $region24
        $region23: #{tpu_custom_call.1} parent=15 // pred_region
          %s198 = sand.u32 %s15, 1
          %s199 = scalar_lea.sflag [#allocation5], %s198
          %s200 = sand.u32 %s78, 1
          %s201 = scalar_lea.vmem [#allocation4], %s200
          %s202 = sadd.s32 %s23, %s24
          %204 = vsyncadd %s199, 0
          %s205 = sadd.s32 %s202, %s22
          %s206 = scalar_lea.hbm %s1, %s205
          %s208 = sshll.u32 %s206, 4
          %s209 = int_to_ptr.hbm [resolvable:$true] %s208
          %s210 = sshll.u32 %s201, 4
          %s211 = int_to_ptr.vmem [resolvable:$true] %s210
          %213 = dma.hbm_to_vmem [thread:$0]  %s209, 16, %s211, %s199
        $region24: #{tpu_custom_call.1} parent=15 // pred_fallthru
          _
        // Predicated region
        $region25: #{tpu_custom_call.1} parent=15 // pred_check
          %p214 = pneg %p118
        $region26: #{tpu_custom_call.1} parent=15 // pred_check_branch
          %216 = sbr.rel (%p214) target = $region28
        $region27: #{tpu_custom_call.1} parent=15 // pred_region
          %s217 = sand.u32 %s15, 1
          %s218 = scalar_lea.sflag [#allocation5], %s217
          %s219 = sand.u32 %s108, 1
          %s220 = smul.addr %s219, 4
          %s221 = scalar_lea.vmem [#allocation6], %s220
          %s222 = sadd.s32 %s23, %s24
          %224 = vsyncadd %s218, 0
          %s225 = smul.addr %s22, 4
          %s226 = sadd.s32 %s222, %s225
          %s227 = scalar_lea.hbm %s2, %s226
          %s228 = sshll.u32 %s227, 4
          %s229 = int_to_ptr.hbm [resolvable:$true] %s228
          %s230 = sshll.u32 %s221, 4
          %s231 = int_to_ptr.vmem [resolvable:$true] %s230
          %236 = dma.hbm_to_vmem [thread:$0]  %s229, 64, %s231, %s218, 16, 16, 1
        $region28: #{tpu_custom_call.1} parent=15 // pred_fallthru
          _
      $region16: #{tpu_custom_call.1} parent=5 // pred_fallthru
        _
      %p237 = scmp.le.s32.totalorder 1, %s15
      %p238 = scmp.lt.s32.totalorder %s15, 3
      %p239 = pnand %p237, %p238
      %p240 = pneg %p239
      // Predicated region
      $region29: #{tpu_custom_call.1} parent=5 // pred_check
        _
      $region30: #{tpu_custom_call.1} parent=5 // pred_check_branch
        %242 = sbr.rel (%p239) target = $region32
      $region31: #{tpu_custom_call.1} parent=5 // pred_region
        %s243 = ssub.s32 %s15, 1
        %s244 = sand.u32 %s51, 1
        %s245 = scalar_lea.sflag [#allocation3], %s244
        %s246 = sand.u32 %s51, 1
        %s247 = smul.addr %s246, 8
        %s248 = scalar_lea.vmem [#allocation2], %s247
        // Predicated region
        $region33: #{tpu_custom_call.1} parent=31 // pred_check
          %p249 = pneg %p64
        $region34: #{tpu_custom_call.1} parent=31 // pred_check_branch
          %251 = sbr.rel (%p249) target = $region36
        $region35: #{tpu_custom_call.1} parent=31 // pred_region
          %253 = dma.done %s245, 128
        $region36: #{tpu_custom_call.1} parent=31 // pred_fallthru
          _
        %s254 = sand.u32 %s20, 1
        %s255 = scalar_lea.sflag [#allocation5], %s254
        %s256 = sand.u32 %s81, 1
        %s257 = scalar_lea.vmem [#allocation4], %s256
        // Predicated region
        $region37: #{tpu_custom_call.1} parent=31 // pred_check
          %p258 = pneg %p94
        $region38: #{tpu_custom_call.1} parent=31 // pred_check_branch
          %260 = sbr.rel (%p258) target = $region40
        $region39: #{tpu_custom_call.1} parent=31 // pred_region
          %262 = dma.done %s255, 16
        $region40: #{tpu_custom_call.1} parent=31 // pred_fallthru
          _
        %s263 = sand.u32 %s20, 1
        %s264 = scalar_lea.sflag [#allocation5], %s263
        %s265 = sand.u32 %s111, 1
        %s266 = smul.addr %s265, 4
        %s267 = scalar_lea.vmem [#allocation6], %s266
        // Predicated region
        $region41: #{tpu_custom_call.1} parent=31 // pred_check
          %p268 = pneg %p124
        $region42: #{tpu_custom_call.1} parent=31 // pred_check_branch
          %270 = sbr.rel (%p268) target = $region44
        $region43: #{tpu_custom_call.1} parent=31 // pred_region
          %272 = dma.done %s264, 64
        $region44: #{tpu_custom_call.1} parent=31 // pred_fallthru
          _
        %s273 = sand.u32 %s51, 1
        %s274 = scalar_lea.sflag [#allocation3], %s273
        %s275 = sand.u32 %s51, 1
        %s276 = smul.addr %s275, 8
        %s277 = scalar_lea.vmem [#allocation2], %s276
        %p278 = pneg %p64
        %p279 = pneg %p61
        %s280 = sand.u32 %s20, 1
        %s281 = scalar_lea.sflag [#allocation5], %s280
        %s282 = sand.u32 %s81, 1
        %s283 = scalar_lea.vmem [#allocation4], %s282
        %p284 = pneg %p94
        %p285 = pneg %p91
        %s286 = sand.u32 %s20, 1
        %s287 = scalar_lea.sflag [#allocation5], %s286
        %s288 = sand.u32 %s111, 1
        %s289 = smul.addr %s288, 4
        %s290 = scalar_lea.vmem [#allocation6], %s289
        %p291 = pneg %p124
        %p292 = pneg %p121
        %p293 = pneg %p152
        %p294 = pneg %p149
        %p295 = scmp.lt.s32.totalorder %s25, 1
        %s296 = scalar_select %p295, %s25, 1
        %p297 = scmp.lt.s32.totalorder %s26, 0
        %s298 = scalar_select %p297, %s26, 0
        %s299 = smul.addr %s298, 3
        %s300 = smul.addr %s296, 3
        %s301 = sadd.s32 %s299, %s300
        %s302 = smul.addr %s301, 8
        %s303 = scalar_lea.vmem %s3, %s302
        %s304 = sadd.s32 %s26, %s27
        %s305 = sadd.s32 %s26, %s27
        %s306 = sadd.s32 %s26, %s27
        %p307 = scmp.lt.s32.totalorder %s25, 1
        %s308 = scalar_select %p307, %s25, 1
        %p309 = scmp.lt.s32.totalorder %s26, 0
        %s310 = scalar_select %p309, %s26, 0
        %s311 = smul.addr %s310, 3
        %s312 = smul.addr %s308, 3
        %s313 = sadd.s32 %s311, %s312
        %s314 = smul.addr %s313, 8
        %s315 = scalar_lea.vmem %s3, %s314
        %p316 = scmp.eq.s32.totalorder %s27, 0
        // Predicated region
        $region45: #{tpu_custom_call.1} parent=31 // pred_check
          %p317 = pneg %p316
        $region46: #{tpu_custom_call.1} parent=31 // pred_check_branch
          %319 = sbr.rel (%p317) target = $region48
        $region47: #{tpu_custom_call.1} parent=31 // pred_region
          %320 = vst [vmem:[%s315] sm:$0xff] 0.0
          %321 = vst [vmem:[%s315 + $0x8] sm:$0xff] 0.0
          %322 = vst [vmem:[%s315 + $0x10] sm:$0x3] 0.0
        $region48: #{tpu_custom_call.1} parent=31 // pred_fallthru
          _
        %v323 = vld [vmem:[%s257] sm:$0x1]
        %v324 = vunpack.c.l.bf16 %v323
        %v325 = vld [vmem:[%s248] sm:$0x3]
        %s326 = scalar_lea.vmem %s248, 2 [#allocation2]
        %v327 = vld [vmem:[%s326] sm:$0x3]
        %s328 = scalar_lea.vmem %s248, 4 [#allocation2]
        %v329 = vld [vmem:[%s328] sm:$0x3]
        %s330 = scalar_lea.vmem %s248, 6 [#allocation2]
        %v331 = vld [vmem:[%s330] sm:$0x3]
        %v332 = vmax.f32 %v325, %v327
        %v333 = vmax.f32 %v332, %v329
        %v334 = vmax.f32 %v333, %v331
        %v335 = vsub.f32 %v325, %v334
        %v336 = vsub.f32 %v327, %v334
        %v337 = vsub.f32 %v329, %v334
        %v338 = vsub.f32 %v331, %v334
        %v339 = vmul.f32 %v335, 1.442695
        %v340 = vpow.pop %v339
        %v341 = vmul.f32 %v336, 1.442695
        %v342 = vpow.pop %v341
        %v343 = vmul.f32 %v337, 1.442695
        %v344 = vpow.pop %v343
        %v345 = vmul.f32 %v338, 1.442695
        %v346 = vpow.pop %v345
        %v347 = vadd.f32 %v340, %v342
        %v348 = vadd.f32 %v347, %v344
        %v349 = vadd.f32 %v348, %v346
        %v350 = vrcp.pop %v349
        %v351 = vmul.f32 %v349, %v350
        %v352 = vsub.f32 1.0, %v351
        %v353 = vmul.f32 %v350, %v352
        %v354 = vadd.f32 %v350, %v353
        %vm355 = vweird.f32 %v349
        %vm356 = vweird.f32 %v350
        %vm357 = vmor %vm355, %vm356
        %v358 = vsel %vm357, %v350, %v354
        %v359 = vand.u32 2147483647, %v349
        %vm360 = vcmp.eq.f32.partialorder %v359, 8.507059e+37
        %v361 = vand.u32 %v349, 2147483648
        %v362 = vor.u32 1.1754944e-38, %v361
        %v363 = vsel %vm360, %v362, %v358
        %v364 = vmul.f32 1.0, %v363
        %v365 = vlog2.pop %v349
        %v366 = vmul.f32 %v365, 0.6931472
        %vm367 = vcmp.eq.f32.partialorder %v324, 255.0
        %v368 = vsel %vm367, 1, 0
        %v369 = vcvt.s32.f32 %v368
        %v370 = vsub.f32 1.0, %v369
        %v371 = vmul.f32 %v340, %v364
        %vm372 = vcmp.eq.f32.partialorder %v324, 0.0
        %v373 = vsel %vm372, 1, 0
        %v374 = vcvt.s32.f32 %v373
        %v375 = vadd.f32 %v374, %v369
        %v376 = vmul.f32 %v371, %v375
        %vm377 = vcmask 1041408
        %v378 = vsel %vm377, %v376, 0.0
        %v379 = vrot.slane %v378, 4
        %v380 = vadd.f32 %v378, %v379
        %v381 = vrot.slane %v380, 2
        %v382 = vadd.f32 %v380, %v381
        %v383 = vrot.slane %v382, 1
        %v384 = vadd.f32 %v382, %v383
        %v385 = vld [vmem:[%s315] sm:$0x1]
        %v386 = vadd.f32 %v385, %v384
        %387 = vst [vmem:[%s315] sm:$0x1] %v386
        %v388 = vsel %vm377, %v371, 0.0
        %v389 = vrot.slane %v388, 4
        %v390 = vadd.f32 %v388, %v389
        %v391 = vrot.slane %v390, 2
        %v392 = vadd.f32 %v390, %v391
        %v393 = vrot.slane %v392, 1
        %v394 = vadd.f32 %v392, %v393
        %v395 = vld [vmem:[%s315 + $0x4] sm:$0x1]
        %v396 = vadd.f32 %v395, %v394
        %397 = vst [vmem:[%s315 + $0x4] sm:$0x1] %v396
        %v398 = vsel %vm377, %v375, 0.0
        %v399 = vrot.slane %v398, 4
        %v400 = vadd.f32 %v398, %v399
        %v401 = vrot.slane %v400, 2
        %v402 = vadd.f32 %v400, %v401
        %v403 = vrot.slane %v402, 1
        %v404 = vadd.f32 %v402, %v403
        %v405 = vld [vmem:[%s315 + $0x8] sm:$0x1]
        %v406 = vadd.f32 %v405, %v404
        %407 = vst [vmem:[%s315 + $0x8] sm:$0x1] %v406
        %v408 = vsub.f32 %v335, %v366
        %v409 = vsub.f32 1.0, %v371
        %v410 = vmul.f32 %v409, %v409
        %v411 = vmul.f32 %v410, %v408
        %v412 = vmul.f32 %v374, %v411
        %v413 = vsel %vm377, %v412, 0.0
        %v414 = vrot.slane %v413, 4
        %v415 = vadd.f32 %v413, %v414
        %v416 = vrot.slane %v415, 2
        %v417 = vadd.f32 %v415, %v416
        %v418 = vrot.slane %v417, 1
        %v419 = vadd.f32 %v417, %v418
        %v420 = vld [vmem:[%s315 + $0xc] sm:$0x1]
        %v421 = vadd.f32 %v420, %v419
        %422 = vst [vmem:[%s315 + $0xc] sm:$0x1] %v421
        %v423 = vld [vmem:[%s267] sm:$0x1]
        %v424 = vunpack.c.l.bf16 %v423
        %v425 = vmul.f32 %v371, %v424
        %v426 = vmul.f32 %v342, %v364
        %vm427 = vcmp.eq.f32.partialorder %v324, 1.0
        %v428 = vsel %vm427, 1, 0
        %v429 = vcvt.s32.f32 %v428
        %v430 = vmul.f32 %v426, %v429
        %v431 = vsel %vm377, %v430, 0.0
        %v432 = vrot.slane %v431, 4
        %v433 = vadd.f32 %v431, %v432
        %v434 = vrot.slane %v433, 2
        %v435 = vadd.f32 %v433, %v434
        %v436 = vrot.slane %v435, 1
        %v437 = vadd.f32 %v435, %v436
        %v438 = vld [vmem:[%s315 + $0x1] sm:$0x1]
        %v439 = vadd.f32 %v438, %v437
        %440 = vst [vmem:[%s315 + $0x1] sm:$0x1] %v439
        %v441 = vsel %vm377, %v426, 0.0
        %v442 = vrot.slane %v441, 4
        %v443 = vadd.f32 %v441, %v442
        %v444 = vrot.slane %v443, 2
        %v445 = vadd.f32 %v443, %v444
        %v446 = vrot.slane %v445, 1
        %v447 = vadd.f32 %v445, %v446
        %v448 = vld [vmem:[%s315 + $0x5] sm:$0x1]
        %v449 = vadd.f32 %v448, %v447
        %450 = vst [vmem:[%s315 + $0x5] sm:$0x1] %v449
        %v451 = vsel %vm377, %v429, 0.0
        %v452 = vrot.slane %v451, 4
        %v453 = vadd.f32 %v451, %v452
        %v454 = vrot.slane %v453, 2
        %v455 = vadd.f32 %v453, %v454
        %v456 = vrot.slane %v455, 1
        %v457 = vadd.f32 %v455, %v456
        %v458 = vld [vmem:[%s315 + $0x9] sm:$0x1]
        %v459 = vadd.f32 %v458, %v457
        %460 = vst [vmem:[%s315 + $0x9] sm:$0x1] %v459
        %v461 = vsub.f32 %v336, %v366
        %v462 = vsub.f32 1.0, %v426
        %v463 = vmul.f32 %v462, %v462
        %v464 = vmul.f32 %v463, %v461
        %v465 = vmul.f32 %v429, %v464
        %v466 = vsel %vm377, %v465, 0.0
        %v467 = vrot.slane %v466, 4
        %v468 = vadd.f32 %v466, %v467
        %v469 = vrot.slane %v468, 2
        %v470 = vadd.f32 %v468, %v469
        %v471 = vrot.slane %v470, 1
        %v472 = vadd.f32 %v470, %v471
        %v473 = vld [vmem:[%s315 + $0xd] sm:$0x1]
        %v474 = vadd.f32 %v473, %v472
        %475 = vst [vmem:[%s315 + $0xd] sm:$0x1] %v474
        %s476 = scalar_lea.vmem %s267, 1 [#allocation6]
        %v477 = vld [vmem:[%s476] sm:$0x1]
        %v478 = vunpack.c.l.bf16 %v477
        %v479 = vmul.f32 %v426, %v478
        %v480 = vadd.f32 %v425, %v479
        %v481 = vmul.f32 %v344, %v364
        %vm482 = vcmp.eq.f32.partialorder %v324, 2.0
        %v483 = vsel %vm482, 1, 0
        %v484 = vcvt.s32.f32 %v483
        %v485 = vmul.f32 %v481, %v484
        %v486 = vsel %vm377, %v485, 0.0
        %v487 = vrot.slane %v486, 4
        %v488 = vadd.f32 %v486, %v487
        %v489 = vrot.slane %v488, 2
        %v490 = vadd.f32 %v488, %v489
        %v491 = vrot.slane %v490, 1
        %v492 = vadd.f32 %v490, %v491
        %v493 = vld [vmem:[%s315 + $0x2] sm:$0x1]
        %v494 = vadd.f32 %v493, %v492
        %495 = vst [vmem:[%s315 + $0x2] sm:$0x1] %v494
        %v496 = vsel %vm377, %v481, 0.0
        %v497 = vrot.slane %v496, 4
        %v498 = vadd.f32 %v496, %v497
        %v499 = vrot.slane %v498, 2
        %v500 = vadd.f32 %v498, %v499
        %v501 = vrot.slane %v500, 1
        %v502 = vadd.f32 %v500, %v501
        %v503 = vld [vmem:[%s315 + $0x6] sm:$0x1]
        %v504 = vadd.f32 %v503, %v502
        %505 = vst [vmem:[%s315 + $0x6] sm:$0x1] %v504
        %v506 = vsel %vm377, %v484, 0.0
        %v507 = vrot.slane %v506, 4
        %v508 = vadd.f32 %v506, %v507
        %v509 = vrot.slane %v508, 2
        %v510 = vadd.f32 %v508, %v509
        %v511 = vrot.slane %v510, 1
        %v512 = vadd.f32 %v510, %v511
        %v513 = vld [vmem:[%s315 + $0xa] sm:$0x1]
        %v514 = vadd.f32 %v513, %v512
        %515 = vst [vmem:[%s315 + $0xa] sm:$0x1] %v514
        %v516 = vsub.f32 %v337, %v366
        %v517 = vsub.f32 1.0, %v481
        %v518 = vmul.f32 %v517, %v517
        %v519 = vmul.f32 %v518, %v516
        %v520 = vmul.f32 %v484, %v519
        %v521 = vsel %vm377, %v520, 0.0
        %v522 = vrot.slane %v521, 4
        %v523 = vadd.f32 %v521, %v522
        %v524 = vrot.slane %v523, 2
        %v525 = vadd.f32 %v523, %v524
        %v526 = vrot.slane %v525, 1
        %v527 = vadd.f32 %v525, %v526
        %v528 = vld [vmem:[%s315 + $0xe] sm:$0x1]
        %v529 = vadd.f32 %v528, %v527
        %530 = vst [vmem:[%s315 + $0xe] sm:$0x1] %v529
        %s531 = scalar_lea.vmem %s267, 2 [#allocation6]
        %v532 = vld [vmem:[%s531] sm:$0x1]
        %v533 = vunpack.c.l.bf16 %v532
        %v534 = vmul.f32 %v481, %v533
        %v535 = vadd.f32 %v480, %v534
        %v536 = vmul.f32 %v346, %v364
        %vm537 = vcmp.eq.f32.partialorder %v324, 3.0
        %v538 = vsel %vm537, 1, 0
        %v539 = vcvt.s32.f32 %v538
        %v540 = vmul.f32 %v536, %v539
        %v541 = vsel %vm377, %v540, 0.0
        %v542 = vrot.slane %v541, 4
        %v543 = vadd.f32 %v541, %v542
        %v544 = vrot.slane %v543, 2
        %v545 = vadd.f32 %v543, %v544
        %v546 = vrot.slane %v545, 1
        %v547 = vadd.f32 %v545, %v546
        %v548 = vld [vmem:[%s315 + $0x3] sm:$0x1]
        %v549 = vadd.f32 %v548, %v547
        %550 = vst [vmem:[%s315 + $0x3] sm:$0x1] %v549
        %v551 = vsel %vm377, %v536, 0.0
        %v552 = vrot.slane %v551, 4
        %v553 = vadd.f32 %v551, %v552
        %v554 = vrot.slane %v553, 2
        %v555 = vadd.f32 %v553, %v554
        %v556 = vrot.slane %v555, 1
        %v557 = vadd.f32 %v555, %v556
        %v558 = vld [vmem:[%s315 + $0x7] sm:$0x1]
        %v559 = vadd.f32 %v558, %v557
        %560 = vst [vmem:[%s315 + $0x7] sm:$0x1] %v559
        %v561 = vsel %vm377, %v539, 0.0
        %v562 = vrot.slane %v561, 4
        %v563 = vadd.f32 %v561, %v562
        %v564 = vrot.slane %v563, 2
        %v565 = vadd.f32 %v563, %v564
        %v566 = vrot.slane %v565, 1
        %v567 = vadd.f32 %v565, %v566
        %v568 = vld [vmem:[%s315 + $0xb] sm:$0x1]
        %v569 = vadd.f32 %v568, %v567
        %570 = vst [vmem:[%s315 + $0xb] sm:$0x1] %v569
        %v571 = vsub.f32 %v338, %v366
        %v572 = vsub.f32 1.0, %v536
        %v573 = vmul.f32 %v572, %v572
        %v574 = vmul.f32 %v573, %v571
        %v575 = vmul.f32 %v539, %v574
        %v576 = vsel %vm377, %v575, 0.0
        %v577 = vrot.slane %v576, 4
        %v578 = vadd.f32 %v576, %v577
        %v579 = vrot.slane %v578, 2
        %v580 = vadd.f32 %v578, %v579
        %v581 = vrot.slane %v580, 1
        %v582 = vadd.f32 %v580, %v581
        %v583 = vld [vmem:[%s315 + $0xf] sm:$0x1]
        %v584 = vadd.f32 %v583, %v582
        %585 = vst [vmem:[%s315 + $0xf] sm:$0x1] %v584
        %s586 = scalar_lea.vmem %s267, 3 [#allocation6]
        %v587 = vld [vmem:[%s586] sm:$0x1]
        %v588 = vunpack.c.l.bf16 %v587
        %v589 = vmul.f32 %v536, %v588
        %v590 = vadd.f32 %v535, %v589
        %v591 = vsel %vm377, %v370, 0.0
        %v592 = vrot.slane %v591, 4
        %v593 = vadd.f32 %v591, %v592
        %v594 = vrot.slane %v593, 2
        %v595 = vadd.f32 %v593, %v594
        %v596 = vrot.slane %v595, 1
        %v597 = vadd.f32 %v595, %v596
        %v598 = vld [vmem:[%s315 + $0x10] sm:$0x1]
        %v599 = vadd.f32 %v598, %v597
        %600 = vst [vmem:[%s315 + $0x10] sm:$0x1] %v599
        %v601 = vsel %vm377, %v590, 0.0
        %v602 = vrot.slane %v601, 4
        %v603 = vadd.f32 %v601, %v602
        %v604 = vrot.slane %v603, 2
        %v605 = vadd.f32 %v603, %v604
        %v606 = vrot.slane %v605, 1
        %v607 = vadd.f32 %v605, %v606
        %v608 = vld [vmem:[%s315 + $0x11] sm:$0x1]
        %v609 = vadd.f32 %v608, %v607
        %610 = vst [vmem:[%s315 + $0x11] sm:$0x1] %v609
        %p611 = scmp.lt.s32.totalorder %s25, 1
        %s612 = scalar_select %p611, %s25, 1
        %p613 = scmp.lt.s32.totalorder %s26, 0
        %s614 = scalar_select %p613, %s26, 0
        %s615 = smul.addr %s614, 3
        %s616 = smul.addr %s612, 3
        %s617 = sadd.s32 %s615, %s616
        %s618 = smul.addr %s617, 8
        %s619 = scalar_lea.vmem %s3, %s618
        // Predicated region
        $region49: #{tpu_custom_call.1} parent=31 // pred_check
          %p620 = pneg %p149
        $region50: #{tpu_custom_call.1} parent=31 // pred_check_branch
          %622 = sbr.rel (%p620) target = $region52
        $region51: #{tpu_custom_call.1} parent=31 // pred_region
          _
        $region52: #{tpu_custom_call.1} parent=31 // pred_fallthru
          _
      $region32: #{tpu_custom_call.1} parent=5 // pred_fallthru
        _
      %p623 = scmp.le.s32.totalorder 2, %s15
      // Predicated region
      $region53: #{tpu_custom_call.1} parent=5 // pred_check
        %p624 = pneg %p623
      $region54: #{tpu_custom_call.1} parent=5 // pred_check_branch
        %626 = sbr.rel (%p624) target = $region56
      $region55: #{tpu_custom_call.1} parent=5 // pred_region
        %s627 = ssub.s32 %s15, 2
        // Predicated region
        $region57: #{tpu_custom_call.1} parent=55 // pred_check
          %p628 = pneg %p155
        $region58: #{tpu_custom_call.1} parent=55 // pred_check_branch
          %630 = sbr.rel (%p628) target = $region60
        $region59: #{tpu_custom_call.1} parent=55 // pred_region
          %p631 = scmp.lt.s32.totalorder %s28, 1
          %s632 = scalar_select %p631, %s28, 1
          %p633 = scmp.lt.s32.totalorder %s29, 0
          %s634 = scalar_select %p633, %s29, 0
          %s635 = smul.addr %s634, 3
          %s636 = smul.addr %s632, 3
          %s637 = sadd.s32 %s635, %s636
          %s638 = smul.addr %s637, 8
          %s639 = scalar_lea.vmem %s3, %s638
        $region60: #{tpu_custom_call.1} parent=55 // pred_fallthru
          _
      $region56: #{tpu_custom_call.1} parent=5 // pred_fallthru
        _
    $region6: #{tpu_custom_call.1} parent=1 // loop_footer
      %s19 = sadd.s32 1, %s15
    $region7: #{tpu_custom_call.1} parent=1 // loop_footer_branch
      %14 = sbr.rel target = $region3
    $region8: #{tpu_custom_call.1} parent=1 // loop_exit
      _
    %640 = vsyncpa [#allocation3], 1
    %s641 = scalar_lea.sflag [#allocation3], 1
    %642 = vsyncpa %s641, 1
    %643 = vsyncpa [#allocation5], 1
    %s644 = scalar_lea.sflag [#allocation5], 1
    %645 = vsyncpa %s644, 1

</llo_original>
